<compile_context>
chip_gen: v5e
topology: v5e:2x2
jax: 0.10.0
libtpu: 0.0.40
codegen_flags: <defaults>
</compile_context>

<pallas_src>
import jax
import jax.numpy as jnp
from jax.experimental import pallas as pl
from jax.experimental.pallas import tpu as pltpu

# ----------------------------- config (small) -------------------------------
CFG = {
    "vocab_size": 512,      # small stand-in for 50257
    "context_length": 64,   # small stand-in for 1024
    "emb_dim": 32,          # small stand-in for 768
    "n_heads": 4,
    "n_layers": 2,
    "drop_rate": 0.1,
    "qkv_bias": False,
}


def _round_up(x, m):
    return ((x + m - 1) // m) * m


def _tile_caps():
    """Per-generation (TM, TN) caps sized against scoped-VMEM defaults."""
    try:
        kind = jax.devices()[0].device_kind.lower()
    except Exception:
        kind = ""
    if "v7" in kind:
        return 512, 1024      # 64 MiB physical / 32 MiB scoped: ~8.5 MB dbl-buffered
    if "v5e" in kind or "v5 lite" in kind or "v5lite" in kind:
        return 512, 512       # 16 MiB scoped default on v5e
    if "v6" in kind or "v5" in kind:
        return 1024, 1024     # v6e / v5p: 128 MiB physical, 32 MiB scoped
    return 512, 1024          # conservative default (fits every generation)


def _choose_tiles(M, V):
    tm_cap, tn_cap = _tile_caps()
    TN = min(tn_cap, _round_up(V, 128))   # lane-dense vocab tiles (multiple of 128)
    TM = min(tm_cap, _round_up(M, 16))    # bf16 packs 16 rows per sublane group
    return TM, TN


# ------------------------------ Pallas kernel --------------------------------
def gpt_head_kernel(x_ref, w_ref, out_ref):
    # x_ref:   [TM, D]  bf16 activation tile (tok + pos, post-identity dummies)
    # w_ref:   [D, TN]  bf16 vocab tile of the (transposed) output-head weight
    # out_ref: [TM, TN] f32 logits tile (f32 MXU accumulation, single K pass)
    out_ref[...] = jnp.dot(
        x_ref[...], w_ref[...], preferred_element_type=jnp.float32
    )


def dummy_gpt_forward(in_idx, params):
    """in_idx: int32 [B, T] token ids -> logits float32 [B, T, V]."""
    tok_table = params["tok_emb"]     # [vocab, D]  bf16
    pos_table = params["pos_emb"]     # [ctx, D]    bf16
    w_pad = params["out_head_t"]      # [D, V_pad]  bf16, padded once at init
    V = params["vocab_size"]

    B, T = in_idx.shape
    D = tok_table.shape[1]
    V_pad = w_pad.shape[1]
    M = B * T

    # Glue: embedding gather + broadcast positional add (fused by XLA, already
    # bf16).  Dropout (eval), dummy transformer blocks and dummy LayerNorm are
    # identity.
    x = (jnp.take(tok_table, in_idx, axis=0) + pos_table[None, :T, :]).reshape(M, D)

    TM, TN = _choose_tiles(M, V)
    assert V_pad % TN == 0, "out_head_t must be padded to a TN multiple at init"
    M_pad = _round_up(M, TM)
    if M_pad != M:
        x = jnp.pad(x, ((0, M_pad - M), (0, 0)))

    # Grid: vocab tiles OUTER (parallel / TC-sharded), token tiles INNER so the
    # weight block index is constant across the inner axis -> weight stays
    # VMEM-resident; only the small activation tile re-streams per step.
    grid = (pl.cdiv(V_pad, TN), pl.cdiv(M_pad, TM))

    logits_flat = pl.pallas_call(
        gpt_head_kernel,
        out_shape=jax.ShapeDtypeStruct((M_pad, V_pad), jnp.float32),
        grid_spec=pl.GridSpec(
            grid=grid,
            in_specs=[
                pl.BlockSpec((TM, D), lambda j, i: (i, 0)),   # activation tile
                pl.BlockSpec((D, TN), lambda j, i: (0, j)),   # weight vocab tile
            ],
            out_specs=pl.BlockSpec((TM, TN), lambda j, i: (i, j)),
        ),
        compiler_params=pltpu.CompilerParams(
            dimension_semantics=("parallel", "arbitrary"),
        ),
    )(x, w_pad)

    return logits_flat[:M, :V].reshape(B, T, V)


# ------------------------------ params init ----------------------------------
def init_params(key, cfg):
    k_tok, k_pos, k_out = jax.random.split(key, 3)
    V, D, C = cfg["vocab_size"], cfg["emb_dim"], cfg["context_length"]
    # Embedding tables in bf16 so the gather + positional add needs no separate
    # cast pass / f32 [M, D] intermediate before the kernel.
    tok_emb = (jax.random.normal(k_tok, (V, D), jnp.float32) * 0.02).astype(jnp.bfloat16)
    pos_emb = (jax.random.normal(k_pos, (C, D), jnp.float32) * 0.02).astype(jnp.bfloat16)
    # nn.Linear(emb_dim, vocab_size, bias=False) weight is [V, D]; store it
    # transposed ([D, V]), in bf16 (kernel accumulates in f32 on the MXU), and
    # padded to a vocab-tile multiple ONCE here (it is a parameter) so there is
    # no per-call jnp.pad of a ~77 MB weight at real shapes.
    w_out = jax.random.normal(k_out, (V, D), jnp.float32) * 0.02
    _, TN = _choose_tiles(1, V)
    V_pad = _round_up(V, TN)
    w_t = w_out.T.astype(jnp.bfloat16)
    if V_pad != V:
        w_t = jnp.pad(w_t, ((0, 0), (0, V_pad - V)))
    return {
        "tok_emb": tok_emb,
        "pos_emb": pos_emb,
        "out_head_t": w_t,
        "vocab_size": V,
    }


# ---------------------------------- main --------------------------------------
if __name__ == "__main__":
    key = jax.random.PRNGKey(0)
    k_params, k_idx = jax.random.split(key)

    params = init_params(k_params, CFG)

    B, T = 2, 8
    in_idx = jax.random.randint(k_idx, (B, T), 0, CFG["vocab_size"], dtype=jnp.int32)

    logits = dummy_gpt_forward(in_idx, params)
    logits = jax.block_until_ready(logits)

    # Pure-JAX reference check (same math, no Pallas).
    V = CFG["vocab_size"]
    tok = jnp.take(params["tok_emb"], in_idx, axis=0)           # [B, T, D] bf16
    pos = params["pos_emb"][None, :T, :]                        # [1, T, D] bf16
    x_ref = (tok + pos).reshape(B * T, -1)
    ref = jnp.dot(x_ref, params["out_head_t"][:, :V],
                  preferred_element_type=jnp.float32).reshape(B, T, V)
    assert logits.shape == (B, T, V)
    assert logits.dtype == jnp.float32
    assert jnp.allclose(logits, ref, atol=1e-3, rtol=1e-3)

    # TODO(synk): dropout uses eval-mode (identity) semantics; training-mode
    # stochastic masking would use pltpu.prng_* inside the kernel.
    # TODO(synk): bf16 params/activations (f32 MXU accumulate) deviate slightly
    # from the PyTorch f32 nn.Linear; keep f32 params if exact f32 logits are
    # required.
    # TODO(synk): token-embedding gather stays in XLA glue; in-kernel gather via
    # scalar prefetch + pl.Element only pays off at production B*T.
    print("KERNEL_OK")
</pallas_src>

<mosaic_0001>
module attributes {stable_mosaic.version = 11 : i64} {
  func.func @gpt_head_kernel(%arg0: i32, %arg1: i32, %arg2: memref<16x32xbf16, #tpu.memory_space<vmem>>, %arg3: memref<32x512xbf16, #tpu.memory_space<vmem>>, %arg4: memref<16x512xf32, #tpu.memory_space<vmem>>) attributes {dimension_semantics = [#tpu.dimension_semantics<parallel>, #tpu.dimension_semantics<arbitrary>], iteration_bounds = array<i64: 1, 1>, scalar_prefetch = 0 : i64, scratch_operands = 0 : i64, tpu.core_type = #tpu.core_type<tc>, window_params = [{transform_indices = @transform_0, window_bounds = array<i64: 16, 32>}, {transform_indices = @transform_1, window_bounds = array<i64: 32, 512>}, {transform_indices = @transform_2, window_bounds = array<i64: 16, 512>}]} {
    %c0 = arith.constant 0 : index
    %c0_0 = arith.constant 0 : index
    %0 = vector.load %arg2[%c0, %c0_0] : memref<16x32xbf16, #tpu.memory_space<vmem>>, vector<16x32xbf16>
    %c0_1 = arith.constant 0 : index
    %c0_2 = arith.constant 0 : index
    %1 = vector.load %arg3[%c0_1, %c0_2] : memref<32x512xbf16, #tpu.memory_space<vmem>>, vector<32x512xbf16>
    %cst = arith.constant dense<0.000000e+00> : vector<16x512xf32>
    %2 = tpu.matmul %0, %1, %cst {dimension_numbers = #tpu.dot_dimension_numbers<[1], [0], [0], [1], [0, 0, 1, 1], [], []>} : vector<16x32xbf16>, vector<32x512xbf16>, vector<16x512xf32> -> vector<16x512xf32>
    %c0_3 = arith.constant 0 : index
    %c0_4 = arith.constant 0 : index
    %3 = vector.load %arg4[%c0_3, %c0_4] : memref<16x512xf32, #tpu.memory_space<vmem>>, vector<16x512xf32>
    tpu.vector_store %arg4[%c0_3, %c0_4], %2 {strides = array<i32>} : memref<16x512xf32, #tpu.memory_space<vmem>>, vector<16x512xf32>,
    return
  }
  func.func @transform_0(%arg0: i32, %arg1: i32) -> (i32, i32) {
    %c0_i32 = arith.constant 0 : i32
    %c0_i32_0 = arith.constant 0 : i32
    return %arg1, %c0_i32 : i32, i32
  }
  func.func @transform_1(%arg0: i32, %arg1: i32) -> (i32, i32) {
    %c0_i32 = arith.constant 0 : i32
    %c0_i32_0 = arith.constant 0 : i32
    return %c0_i32, %arg0 : i32, i32
  }
  func.func @transform_2(%arg0: i32, %arg1: i32) -> (i32, i32) {
    %c0_i32 = arith.constant 0 : i32
    return %arg1, %arg0 : i32, i32
  }
}

</mosaic_0001>

<llo_original>
// kernel: tpu_custom_call.1
$region0: #{tpu_custom_call.1}
  #allocation0 [shape = 'u32[]', space=smem, size = 0x4, offset = 0x4, fixed_abs, tag = 'smem constant byte address 0x4 - core index']
  #allocation1 [shape = 'u32[72,128]{1,0:T(1,128)}', space=vmem, size = 0x9000, scoped, tag = 'internal scratch']
  %s0 = inlined_call_operand.hbm [shape: bf16[16,32], index: 0, kind: input, shape index: {}]
  %s1 = inlined_call_operand.hbm [shape: bf16[32,512], index: 1, kind: input, shape index: {}]
  %s2 = inlined_call_operand.hbm [shape: f32[16,512], index: 2, kind: output, shape index: {}]
  %s3 = sld [smem:[#allocation0]]
  $region26: #{tpu_custom_call.1} parent=0
    _
  %s5 = ssub.s32 1, %s3
  %s6 = scalar_select 0, %s5, %s3
  $region1: #{tpu_custom_call.1} parent=0
    #allocation2 [shape = 'u8[4096]{0}', space=vmem, size = 0x1000, scoped, tag = 'input window, operand 0, single buffered']
    #allocation3 [shape = 's32[1]{0}', space=sflag, size = 0x4, scoped, tag = 'scoped memory for tpu_custom_call.1']
    #allocation4 [shape = 's32[1]{0}', space=sflag, size = 0x4, scoped, tag = 'scoped memory for tpu_custom_call.1']
    #allocation5 [shape = 'u8[32768]{0}', space=vmem, size = 0x8000, scoped, tag = 'input window, operand 1, single buffered']
    #allocation6 [shape = 's32[1]{0}', space=sflag, size = 0x4, scoped, tag = 'scoped memory for tpu_custom_call.1']
    #allocation7 [shape = 'u8[32768]{0}', space=vmem, size = 0x8000, scoped, tag = 'output window, operand 0, single buffered']
    %7 = vsyncpa [#allocation3], 0
    %8 = vsyncpa [#allocation6], 0
    %9 = vsyncpa [#allocation4], 0
    // Predicated region
    $region2: #{tpu_custom_call.1} parent=1 // pred_check
      _
    $region3: #{tpu_custom_call.1} parent=1 // pred_check_branch
      %11 = sbr.rel (0) target = $region5
    $region4: #{tpu_custom_call.1} parent=1 // pred_region
      %13 = vsyncadd [#allocation3], 0
      %s14 = sshll.u32 %s0, 4
      %s15 = int_to_ptr.hbm [resolvable:$true] %s14
      %s16 = sshll.u32 [#allocation2], 4
      %s17 = int_to_ptr.vmem [resolvable:$true] %s16
      %22 = dma.hbm_to_vmem [thread:$0]  %s15, 128, %s17, [#allocation3], 64, 64, 4
    $region5: #{tpu_custom_call.1} parent=1 // pred_fallthru
      _
    // Predicated region
    $region6: #{tpu_custom_call.1} parent=1 // pred_check
      _
    $region7: #{tpu_custom_call.1} parent=1 // pred_check_branch
      %24 = sbr.rel (0) target = $region9
    $region8: #{tpu_custom_call.1} parent=1 // pred_region
      %26 = vsyncadd [#allocation6], 0
      %s27 = sshll.u32 %s1, 4
      %s28 = int_to_ptr.hbm [resolvable:$true] %s27
      %s29 = sshll.u32 [#allocation5], 4
      %s30 = int_to_ptr.vmem [resolvable:$true] %s29
      %35 = dma.hbm_to_vmem [thread:$0]  %s28, 1024, %s30, [#allocation6], 256, 256, 16
    $region9: #{tpu_custom_call.1} parent=1 // pred_fallthru
      _
    // Predicated region
    $region10: #{tpu_custom_call.1} parent=1 // pred_check
      _
    $region11: #{tpu_custom_call.1} parent=1 // pred_check_branch
      %37 = sbr.rel (0) target = $region13
    $region12: #{tpu_custom_call.1} parent=1 // pred_region
      %39 = dma.done [#allocation3], 128
    $region13: #{tpu_custom_call.1} parent=1 // pred_fallthru
      _
    // Predicated region
    $region14: #{tpu_custom_call.1} parent=1 // pred_check
      _
    $region15: #{tpu_custom_call.1} parent=1 // pred_check_branch
      %41 = sbr.rel (0) target = $region17
    $region16: #{tpu_custom_call.1} parent=1 // pred_region
      %43 = dma.done [#allocation6], 1024
    $region17: #{tpu_custom_call.1} parent=1 // pred_fallthru
      _
    %v45 = vld [vmem:[#allocation2] sm:$0xf]
    %v46 = vld [vmem:[#allocation2 + $0x4] sm:$0xf]
    %v47 = vld [vmem:[#allocation5] sm:$0xff]
    %v48 = vld [vmem:[#allocation5 + $0x8] sm:$0xff]
    %v49 = vld [vmem:[#allocation5 + $0x10] sm:$0xff]
    %v50 = vld [vmem:[#allocation5 + $0x18] sm:$0xff]
    %v51 = vld [vmem:[#allocation5 + $0x20] sm:$0xff]
    %v52 = vld [vmem:[#allocation5 + $0x28] sm:$0xff]
    %v53 = vld [vmem:[#allocation5 + $0x30] sm:$0xff]
    %v54 = vld [vmem:[#allocation5 + $0x38] sm:$0xff]
    %v57 = vunpack.c.l.b16 %v45
    %v58 = vunpack.c.l.b16 %v46
    %v59 = vpack.c.b16 %v58, %v57
    %v68 = vunpack.c.l.b16 %v47
    %v69 = vunpack.c.h.b16 %v47
    %v70 = vunpack.c.l.b16 %v48
    %v71 = vunpack.c.h.b16 %v48
    %v72 = vunpack.c.l.b16 %v49
    %v73 = vunpack.c.h.b16 %v49
    %v74 = vunpack.c.l.b16 %v50
    %v75 = vunpack.c.h.b16 %v50
    %v76 = vunpack.c.l.b16 %v51
    %v77 = vunpack.c.h.b16 %v51
    %v78 = vunpack.c.l.b16 %v52
    %v79 = vunpack.c.h.b16 %v52
    %v80 = vunpack.c.l.b16 %v53
    %v81 = vunpack.c.h.b16 %v53
    %v82 = vunpack.c.l.b16 %v54
    %v83 = vunpack.c.h.b16 %v54
    %v84 = vpack.c.b16 %v72, %v68
    %v85 = vpack.c.b16 %v73, %v69
    %v86 = vpack.c.b16 %v74, %v70
    %v87 = vpack.c.b16 %v75, %v71
    %v88 = vpack.c.b16 %v80, %v76
    %v89 = vpack.c.b16 %v81, %v77
    %v90 = vpack.c.b16 %v82, %v78
    %v91 = vpack.c.b16 %v83, %v79
    %vm100 = vcmask 261120
    %v102 = vsel %vm100, %v59, 0
    %104 = vmatpush.bf16.msra.mxu0 0
    %105 = vmatpush.bf16.msra.mxu0 0
    %106 = vmatpush.bf16.msra.mxu0 0
    %107 = vmatpush.bf16.msra.mxu0 0
    %108 = vmatpush.bf16.msra.mxu0 0
    %109 = vmatpush.bf16.msra.mxu0 0
    %110 = vmatpush.bf16.msra.mxu0 %v88
    %111 = vmatpush.bf16.msra.mxu0 %v84
    %112 = vmatmul.bf16.gmra.mxu0 %v102
    %v113 = vpop.f32.mrf.mxu0
    %v114 = vadd.f32 0.0, %v113
    %v115 = vpop.f32.mrf.mxu0
    %v116 = vadd.f32 0.0, %v115
    %117 = vdwg.mxu0
    %118 = vmatpush.bf16.msra.mxu0 0
    %119 = vmatpush.bf16.msra.mxu0 0
    %120 = vmatpush.bf16.msra.mxu0 0
    %121 = vmatpush.bf16.msra.mxu0 0
    %122 = vmatpush.bf16.msra.mxu0 0
    %123 = vmatpush.bf16.msra.mxu0 0
    %124 = vmatpush.bf16.msra.mxu0 %v89
    %125 = vmatpush.bf16.msra.mxu0 %v85
    %126 = vmatmul.bf16.gmra.mxu0 %v102
    %v127 = vpop.f32.mrf.mxu0
    %v128 = vadd.f32 0.0, %v127
    %v129 = vpop.f32.mrf.mxu0
    %v130 = vadd.f32 0.0, %v129
    %131 = vdwg.mxu0
    %132 = vmatpush.bf16.msra.mxu0 0
    %133 = vmatpush.bf16.msra.mxu0 0
    %134 = vmatpush.bf16.msra.mxu0 0
    %135 = vmatpush.bf16.msra.mxu0 0
    %136 = vmatpush.bf16.msra.mxu0 0
    %137 = vmatpush.bf16.msra.mxu0 0
    %138 = vmatpush.bf16.msra.mxu0 %v90
    %139 = vmatpush.bf16.msra.mxu0 %v86
    %140 = vmatmul.bf16.gmra.mxu0 %v102
    %v141 = vpop.f32.mrf.mxu0
    %v142 = vadd.f32 0.0, %v141
    %v143 = vpop.f32.mrf.mxu0
    %v144 = vadd.f32 0.0, %v143
    %145 = vdwg.mxu0
    %146 = vmatpush.bf16.msra.mxu0 0
    %147 = vmatpush.bf16.msra.mxu0 0
    %148 = vmatpush.bf16.msra.mxu0 0
    %149 = vmatpush.bf16.msra.mxu0 0
    %150 = vmatpush.bf16.msra.mxu0 0
    %151 = vmatpush.bf16.msra.mxu0 0
    %152 = vmatpush.bf16.msra.mxu0 %v91
    %153 = vmatpush.bf16.msra.mxu0 %v87
    %154 = vmatmul.bf16.gmra.mxu0 %v102
    %v155 = vpop.f32.mrf.mxu0
    %v156 = vadd.f32 0.0, %v155
    %v157 = vpop.f32.mrf.mxu0
    %v158 = vadd.f32 0.0, %v157
    %159 = vdwg.mxu0
    %160 = vst [vmem:[#allocation7] sm:$0xff] %v114
    %161 = vst [vmem:[#allocation7 + $0x8] sm:$0xff] %v128
    %162 = vst [vmem:[#allocation7 + $0x10] sm:$0xff] %v142
    %163 = vst [vmem:[#allocation7 + $0x18] sm:$0xff] %v156
    %164 = vst [vmem:[#allocation7 + $0x20] sm:$0xff] %v116
    %165 = vst [vmem:[#allocation7 + $0x28] sm:$0xff] %v130
    %166 = vst [vmem:[#allocation7 + $0x30] sm:$0xff] %v144
    %167 = vst [vmem:[#allocation7 + $0x38] sm:$0xff] %v158
    // Predicated region
    $region18: #{tpu_custom_call.1} parent=1 // pred_check
      _
    $region19: #{tpu_custom_call.1} parent=1 // pred_check_branch
      %169 = sbr.rel (0) target = $region21
    $region20: #{tpu_custom_call.1} parent=1 // pred_region
      %171 = vsyncadd [#allocation4], 0
      %s172 = sshll.u32 [#allocation7], 4
      %s173 = int_to_ptr.vmem [resolvable:$true] %s172
      %s174 = sshll.u32 %s2, 4
      %s175 = int_to_ptr.hbm [resolvable:$true] %s174
      %180 = dma.vmem_to_hbm [thread:$0]  %s173, 1024, %s175, [#allocation4], 512, 512, 32
    $region21: #{tpu_custom_call.1} parent=1 // pred_fallthru
      _
    // Predicated region
    $region22: #{tpu_custom_call.1} parent=1 // pred_check
      _
    $region23: #{tpu_custom_call.1} parent=1 // pred_check_branch
      %182 = sbr.rel (0) target = $region25
    $region24: #{tpu_custom_call.1} parent=1 // pred_region
      %184 = dma.done [#allocation4], 1024
    $region25: #{tpu_custom_call.1} parent=1 // pred_fallthru
      _
    %185 = vsyncpa [#allocation3], 1
    %186 = vsyncpa [#allocation6], 1
    %187 = vsyncpa [#allocation4], 1

</llo_original>
